<compile_context>
chip_gen: v6e
topology: v6e:2x2x1
jax: 0.10.0
libtpu: 0.0.40
codegen_flags: <defaults>
</compile_context>

<pallas_src>
import math

import jax
import jax.numpy as jnp
from jax import lax
from jax.experimental import pallas as pl
from jax.experimental.pallas import tpu as pltpu

D_MODEL = 128   # hidden dim of the cloning samples
D_RES = 512     # residual linear output dim


def _cloning_attention_kernel(x_ref,       # (TB, N, 128) bf16
                              wfu_ref,     # (128, 896)   bf16  residual|q|k|v fused
                              bfu_ref,     # (1, 896)     f32
                              mask_ref,    # (R, R)       f32   additive block-diag bias
                              wof_ref,     # (1, 128)     f32   (wo @ wf)^T
                              bof_ref,     # (1, 1)       f32   bo @ wf + bf
                              o_ref):      # (TB, 512)    f32
    """Processes TB batch elements: x (TB, N, 128) -> out (TB, 512)."""
    TB, N, D = x_ref.shape
    R = TB * N

    x = x_ref[...].reshape(R, D)                                        # (R, 128) bf16

    # Fused residual|q|k|v projection (bf16 MXU, f32 accumulate).  The q
    # columns were pre-scaled by 1/sqrt(128) in the wrapper.
    y = jnp.dot(x, wfu_ref[...],
                preferred_element_type=jnp.float32) + bfu_ref[...]      # (R, 896) f32
    residual = y[:, :D_RES]                                             # (R, 512)
    q = y[:, D_RES:D_RES + D].astype(jnp.bfloat16)                      # (R, 128)
    k = y[:, D_RES + D:D_RES + 2 * D].astype(jnp.bfloat16)              # (R, 128)
    v = y[:, D_RES + 2 * D:].astype(jnp.bfloat16)                       # (R, 128)

    # TODO(synk): the original `Attention(128)` module source is not provided;
    # implemented as single-head scaled dot-product self-attention with biased
    # q/k/v/output projections (scale folded into wq, out-proj folded into wof).
    #
    # Packed block-diagonal attention: one (R, R) score matmul for all TB
    # batch elements; the precomputed additive bias (-1e30 off-block) keeps
    # each element attending only within its own N rows.
    scores = lax.dot_general(q, k,
                             dimension_numbers=(((1,), (1,)), ((), ())),
                             preferred_element_type=jnp.float32)        # (R, R)
    scores = scores + mask_ref[...]

    m = jnp.max(scores, axis=-1, keepdims=True)
    e = jnp.exp(scores - m)
    denom = jnp.sum(e, axis=-1, keepdims=True)                          # (R, 1)
    # Unnormalized PV matmul; divide the (R, 128) context instead of the
    # (R, R) probabilities (smaller VPU pass, one fewer (R, R) temporary).
    ctx = jnp.dot(e.astype(jnp.bfloat16), v,
                  preferred_element_type=jnp.float32)                   # (R, 128)
    ctx = ctx * pl.reciprocal(denom, approx=True)                       # EUP recip

    # Folded (attention out-proj -> fc_after_attention): 1-wide output, so a
    # VPU multiply + lane reduction beats an N=1 MXU matmul.
    s = jnp.sum(ctx * wof_ref[...], axis=-1, keepdims=True) + bof_ref[...]  # (R, 1)
    s = s / (1.0 + jnp.abs(s))                                          # softsign

    # bmm(w^T, residual) with the per-batch L2 normalization applied AFTER
    # the N-deep sublane reduction (no (R,R)x(R,1) matmul, no mask reuse).
    s3 = s.reshape(TB, N, 1)
    u = jnp.sum(s3 * residual.reshape(TB, N, D_RES), axis=1)            # (TB, 512)
    sumsq = jnp.sum(s3 * s3, axis=1)                                    # (TB, 1)
    o_ref[...] = (u * lax.rsqrt(jnp.maximum(sumsq, 1e-24))).astype(o_ref.dtype)


def init_params(key):
    keys = jax.random.split(key, 12)

    def lin(kw, kb, fan_in, fan_out):
        bound = 1.0 / math.sqrt(fan_in)
        w = jax.random.uniform(kw, (fan_in, fan_out), jnp.float32, -bound, bound)
        b = jax.random.uniform(kb, (1, fan_out), jnp.float32, -bound, bound)
        return w, b

    wr, br = lin(keys[0], keys[1], D_MODEL, D_RES)     # residual_linear_layer
    wq, bq = lin(keys[2], keys[3], D_MODEL, D_MODEL)   # attention q proj
    wk, bk = lin(keys[4], keys[5], D_MODEL, D_MODEL)   # attention k proj
    wv, bv = lin(keys[6], keys[7], D_MODEL, D_MODEL)   # attention v proj
    wo, bo = lin(keys[8], keys[9], D_MODEL, D_MODEL)   # attention out proj
    wf, bf = lin(keys[10], keys[11], D_MODEL, 1)       # fc_after_attention
    return (wr, br, wq, bq, wk, bk, wv, bv, wo, bo, wf, bf)


def _pick_tb(B, N, rows_target=256):
    """Batch-tile size: pack ~rows_target rows per step to fill the MXU M dim,
    prefer TB | B (no padded HBM copy) and >=2 grid blocks (v7x dual-TC)."""
    if B * N <= rows_target:
        half = B // 2
        if B % 2 == 0 and half % 8 == 0 and half * N >= 128:
            return half                          # 2 blocks, each still >=128 rows
        return B                                 # one step covers the whole batch
    tb_max = max(1, rows_target // N)
    if tb_max >= B:
        return B
    # Prefer a TB dividing B (avoids a padded copy of x) with the (TB, 512)
    # output block sublane-aligned.
    for tb in range(tb_max, 0, -1):
        if B % tb == 0 and tb % 8 == 0:
            return tb
    # TODO(synk): for very large N (R = 8*N >> 1024) the packed (R,R) score
    # path should be replaced by flash-style tiling over N (esp. on v7x's
    # 64 MiB VMEM); not implemented here.
    return max(8, (tb_max // 8) * 8)


def _const_spec(arr):
    nd = arr.ndim
    return pl.BlockSpec(arr.shape, lambda b, _nd=nd: (0,) * _nd)


def cloning_samples_attention(x, params):
    (wr, br, wq, bq, wk, bk, wv, bv, wo, bo, wf, bf) = params
    B, N, D = x.shape
    assert D == D_MODEL

    # Fuse residual|q|k|v into one (128, 896) weight, pre-scaling the q
    # columns by 1/sqrt(128), and fold the attention output projection into
    # fc_after_attention (wof = wo @ wf, bof = bo @ wf + bf).
    scale = 1.0 / math.sqrt(D_MODEL)
    w_fused = jnp.concatenate([wr, wq * scale, wk, wv], axis=1).astype(jnp.bfloat16)
    b_fused = jnp.concatenate([br, bq * scale, bk, bv], axis=1)          # (1, 896) f32
    wof = (wo @ wf).T                                                    # (1, 128) f32
    bof = bo @ wf + bf                                                   # (1, 1)   f32

    TB = _pick_tb(B, N)
    n_blocks = pl.cdiv(B, TB)
    B_pad = n_blocks * TB

    x = x.astype(jnp.bfloat16)
    if B_pad != B:
        # Fallback only (TB is chosen to divide B when possible).  Padded
        # rows are zeros, stay confined to their own attention blocks, and
        # their outputs are sliced away below.
        x = jnp.pad(x, ((0, B_pad - B), (0, 0), (0, 0)))

    # Precomputed block-diagonal additive bias: 0 within a batch element's
    # own N rows, -1e30 across batch elements.  Grid-invariant -> const spec.
    R = TB * N
    blk = jnp.arange(R, dtype=jnp.int32) // N
    mask_bias = jnp.where(blk[:, None] == blk[None, :], 0.0, -1e30).astype(jnp.float32)

    out = pl.pallas_call(
        _cloning_attention_kernel,
        out_shape=jax.ShapeDtypeStruct((B_pad, D_RES), jnp.float32),
        grid=(n_blocks,),
        in_specs=[pl.BlockSpec((TB, N, D), lambda b: (b, 0, 0)),
                  _const_spec(w_fused), _const_spec(b_fused),
                  _const_spec(mask_bias),
                  _const_spec(wof), _const_spec(bof)],
        out_specs=pl.BlockSpec((TB, D_RES), lambda b: (b, 0)),
        compiler_params=pltpu.CompilerParams(
            dimension_semantics=("parallel",)),
    )(x, w_fused, b_fused, mask_bias, wof, bof)
    return out if B_pad == B else out[:B]                               # (B, 512)


def _reference(x, params):
    """Pure-JAX f32 reference for correctness checking."""
    (wr, br, wq, bq, wk, bk, wv, bv, wo, bo, wf, bf) = params
    residual = x @ wr + br                                              # (B, N, 512)
    q = x @ wq + bq
    k = x @ wk + bk
    v = x @ wv + bv
    scores = jnp.einsum('bnd,bmd->bnm', q, k) / math.sqrt(D_MODEL)
    attn = jax.nn.softmax(scores, axis=-1)
    ctx = jnp.einsum('bnm,bmd->bnd', attn, v)
    attn_out = ctx @ wo + bo
    s = (attn_out @ wf + bf)[..., 0]                                    # (B, N)
    s = s / (1.0 + jnp.abs(s))
    s = s / jnp.maximum(jnp.linalg.norm(s, axis=1, keepdims=True), 1e-12)
    out = jnp.einsum('bn,bnd->bd', s, residual)                         # (B, 512)
    return out


if __name__ == "__main__":
    key = jax.random.PRNGKey(0)
    k_params, k_x = jax.random.split(key)

    params = init_params(k_params)
    B, N = 2, 8                      # batch of 2, 8 cloning samples each
    x = jax.random.normal(k_x, (B, N, D_MODEL), dtype=jnp.float32)

    out = cloning_samples_attention(x, params)
    out = jax.block_until_ready(out)

    ref = _reference(x, params)
    assert out.shape == (B, D_RES), out.shape
    # Tolerance relaxed vs 1e-4 because the kernel feeds the MXU bf16 operands
    # (f32 accumulation) and uses the EUP approximate reciprocal for softmax.
    assert jnp.allclose(out, ref, atol=3e-2, rtol=3e-2), "mismatch vs reference"

    print("KERNEL_OK")
</pallas_src>

<mosaic_0001>
module attributes {stable_mosaic.version = 11 : i64} {
  func.func @_cloning_attention_kernel(%arg0: i32, %arg1: memref<2x8x128xbf16, #tpu.memory_space<vmem>>, %arg2: memref<128x896xbf16, #tpu.memory_space<vmem>>, %arg3: memref<1x896xf32, #tpu.memory_space<vmem>>, %arg4: memref<16x16xf32, #tpu.memory_space<vmem>>, %arg5: memref<1x128xf32, #tpu.memory_space<vmem>>, %arg6: memref<1x1xf32, #tpu.memory_space<vmem>>, %arg7: memref<2x512xf32, #tpu.memory_space<vmem>>) attributes {dimension_semantics = [#tpu.dimension_semantics<parallel>], iteration_bounds = array<i64: 1>, scalar_prefetch = 0 : i64, scratch_operands = 0 : i64, tpu.core_type = #tpu.core_type<tc>, window_params = [{transform_indices = @transform_0, window_bounds = array<i64: 2, 8, 128>}, {pipeline_mode = #tpu.pipeline_mode<synchronous>, transform_indices = @transform_1, window_bounds = array<i64: 128, 896>}, {pipeline_mode = #tpu.pipeline_mode<synchronous>, transform_indices = @transform_2, window_bounds = array<i64: 1, 896>}, {pipeline_mode = #tpu.pipeline_mode<synchronous>, transform_indices = @transform_3, window_bounds = array<i64: 16, 16>}, {pipeline_mode = #tpu.pipeline_mode<synchronous>, transform_indices = @transform_4, window_bounds = array<i64: 1, 128>}, {pipeline_mode = #tpu.pipeline_mode<synchronous>, transform_indices = @transform_5, window_bounds = array<i64: 1, 1>}, {transform_indices = @transform_6, window_bounds = array<i64: 2, 512>}]} {
    %c0 = arith.constant 0 : index
    %c0_0 = arith.constant 0 : index
    %c0_1 = arith.constant 0 : index
    %0 = vector.load %arg1[%c0, %c0_0, %c0_1] : memref<2x8x128xbf16, #tpu.memory_space<vmem>>, vector<2x8x128xbf16>
    %1 = vector.shape_cast %0 : vector<2x8x128xbf16> to vector<16x128xbf16>
    %c0_2 = arith.constant 0 : index
    %c0_3 = arith.constant 0 : index
    %2 = vector.load %arg2[%c0_2, %c0_3] : memref<128x896xbf16, #tpu.memory_space<vmem>>, vector<128x896xbf16>
    %cst = arith.constant dense<0.000000e+00> : vector<16x896xf32>
    %3 = tpu.matmul %1, %2, %cst {dimension_numbers = #tpu.dot_dimension_numbers<[1], [0], [0], [1], [0, 0, 1, 1], [], []>} : vector<16x128xbf16>, vector<128x896xbf16>, vector<16x896xf32> -> vector<16x896xf32>
    %c0_4 = arith.constant 0 : index
    %c0_5 = arith.constant 0 : index
    %4 = vector.load %arg3[%c0_4, %c0_5] : memref<1x896xf32, #tpu.memory_space<vmem>>, vector<1x896xf32>
    %5 = vector.broadcast %4 : vector<1x896xf32> to vector<16x896xf32>
    %6 = arith.addf %3, %5 : vector<16x896xf32>
    %7 = vector.extract_strided_slice %6 {offsets = [0, 0], sizes = [16, 512], strides = [1, 1]} : vector<16x896xf32> to vector<16x512xf32>
    %8 = vector.extract_strided_slice %6 {offsets = [0, 512], sizes = [16, 128], strides = [1, 1]} : vector<16x896xf32> to vector<16x128xf32>
    %9 = arith.truncf %8 : vector<16x128xf32> to vector<16x128xbf16>
    %10 = vector.extract_strided_slice %6 {offsets = [0, 640], sizes = [16, 128], strides = [1, 1]} : vector<16x896xf32> to vector<16x128xf32>
    %11 = arith.truncf %10 : vector<16x128xf32> to vector<16x128xbf16>
    %12 = vector.extract_strided_slice %6 {offsets = [0, 768], sizes = [16, 128], strides = [1, 1]} : vector<16x896xf32> to vector<16x128xf32>
    %13 = arith.truncf %12 : vector<16x128xf32> to vector<16x128xbf16>
    %cst_6 = arith.constant dense<0.000000e+00> : vector<16x16xf32>
    %14 = tpu.matmul %9, %11, %cst_6 {dimension_numbers = #tpu.dot_dimension_numbers<[1], [1], [0], [0], [0, 0, 1, 0], [], []>} : vector<16x128xbf16>, vector<16x128xbf16>, vector<16x16xf32> -> vector<16x16xf32>
    %c0_7 = arith.constant 0 : index
    %c0_8 = arith.constant 0 : index
    %15 = vector.load %arg4[%c0_7, %c0_8] : memref<16x16xf32, #tpu.memory_space<vmem>>, vector<16x16xf32>
    %16 = arith.addf %14, %15 : vector<16x16xf32>
    %cst_9 = arith.constant dense<0xFF800000> : vector<16xf32>
    %17 = vector.multi_reduction <maximumf>, %16, %cst_9 [1] : vector<16x16xf32> to vector<16xf32>
    %18 = vector.shape_cast %17 : vector<16xf32> to vector<16x1xf32>
    %19 = vector.broadcast %18 : vector<16x1xf32> to vector<16x16xf32>
    %20 = arith.subf %16, %19 : vector<16x16xf32>
    %21 = math.exp %20 : vector<16x16xf32>
    %cst_10 = arith.constant dense<0.000000e+00> : vector<16xf32>
    %22 = vector.multi_reduction <add>, %21, %cst_10 [1] : vector<16x16xf32> to vector<16xf32>
    %23 = vector.shape_cast %22 : vector<16xf32> to vector<16x1xf32>
    %24 = arith.truncf %21 : vector<16x16xf32> to vector<16x16xbf16>
    %cst_11 = arith.constant dense<0.000000e+00> : vector<16x128xf32>
    %25 = tpu.matmul %24, %13, %cst_11 {dimension_numbers = #tpu.dot_dimension_numbers<[1], [0], [0], [1], [0, 0, 1, 1], [], []>} : vector<16x16xbf16>, vector<16x128xbf16>, vector<16x128xf32> -> vector<16x128xf32>
    %26 = tpu.reciprocal %23 {approx = true} : vector<16x1xf32> -> vector<16x1xf32>
    %27 = vector.broadcast %26 : vector<16x1xf32> to vector<16x128xf32>
    %28 = arith.mulf %25, %27 : vector<16x128xf32>
    %c0_12 = arith.constant 0 : index
    %c0_13 = arith.constant 0 : index
    %29 = vector.load %arg5[%c0_12, %c0_13] : memref<1x128xf32, #tpu.memory_space<vmem>>, vector<1x128xf32>
    %30 = vector.broadcast %29 : vector<1x128xf32> to vector<16x128xf32>
    %31 = arith.mulf %28, %30 : vector<16x128xf32>
    %cst_14 = arith.constant dense<0.000000e+00> : vector<16xf32>
    %32 = vector.multi_reduction <add>, %31, %cst_14 [1] : vector<16x128xf32> to vector<16xf32>
    %33 = vector.shape_cast %32 : vector<16xf32> to vector<16x1xf32>
    %c0_15 = arith.constant 0 : index
    %c0_16 = arith.constant 0 : index
    %34 = vector.load %arg6[%c0_15, %c0_16] : memref<1x1xf32, #tpu.memory_space<vmem>>, vector<1x1xf32>
    %35 = vector.broadcast %34 : vector<1x1xf32> to vector<16x1xf32>
    %36 = arith.addf %33, %35 : vector<16x1xf32>
    %37 = math.absf %36 : vector<16x1xf32>
    %cst_17 = arith.constant 1.000000e+00 : f32
    %38 = vector.broadcast %cst_17 : f32 to vector<16x1xf32>
    %39 = arith.addf %38, %37 : vector<16x1xf32>
    %40 = arith.divf %36, %39 : vector<16x1xf32>
    %41 = vector.shape_cast %40 : vector<16x1xf32> to vector<2x8x1xf32>
    %42 = vector.shape_cast %7 : vector<16x512xf32> to vector<2x8x512xf32>
    %43 = vector.broadcast %41 : vector<2x8x1xf32> to vector<2x8x512xf32>
    %44 = arith.mulf %43, %42 : vector<2x8x512xf32>
    %cst_18 = arith.constant dense<0.000000e+00> : vector<2x512xf32>
    %45 = vector.multi_reduction <add>, %44, %cst_18 [1] : vector<2x8x512xf32> to vector<2x512xf32>
    %46 = arith.mulf %41, %41 : vector<2x8x1xf32>
    %cst_19 = arith.constant dense<0.000000e+00> : vector<2x1xf32>
    %47 = vector.multi_reduction <add>, %46, %cst_19 [1] : vector<2x8x1xf32> to vector<2x1xf32>
    %cst_20 = arith.constant 1.000000e-24 : f32
    %48 = vector.broadcast %cst_20 : f32 to vector<2x1xf32>
    %49 = arith.maximumf %47, %48 : vector<2x1xf32>
    %50 = math.rsqrt %49 : vector<2x1xf32>
    %51 = vector.broadcast %50 : vector<2x1xf32> to vector<2x512xf32>
    %52 = arith.mulf %45, %51 : vector<2x512xf32>
    %c0_21 = arith.constant 0 : index
    %c0_22 = arith.constant 0 : index
    %53 = vector.load %arg7[%c0_21, %c0_22] : memref<2x512xf32, #tpu.memory_space<vmem>>, vector<2x512xf32>
    tpu.vector_store %arg7[%c0_21, %c0_22], %52 {strides = array<i32>} : memref<2x512xf32, #tpu.memory_space<vmem>>, vector<2x512xf32>,
    return
  }
  func.func @transform_0(%arg0: i32) -> (i32, i32, i32) {
    %c0_i32 = arith.constant 0 : i32
    %c0_i32_0 = arith.constant 0 : i32
    %c0_i32_1 = arith.constant 0 : i32
    return %arg0, %c0_i32, %c0_i32_0 : i32, i32, i32
  }
  func.func @transform_1(%arg0: i32) -> (i32, i32) {
    %c0_i32 = arith.constant 0 : i32
    %c0_i32_0 = arith.constant 0 : i32
    %c0_i32_1 = arith.constant 0 : i32
    return %c0_i32, %c0_i32_0 : i32, i32
  }
  func.func @transform_2(%arg0: i32) -> (i32, i32) {
    %c0_i32 = arith.constant 0 : i32
    %c0_i32_0 = arith.constant 0 : i32
    %c0_i32_1 = arith.constant 0 : i32
    return %c0_i32, %c0_i32_0 : i32, i32
  }
  func.func @transform_3(%arg0: i32) -> (i32, i32) {
    %c0_i32 = arith.constant 0 : i32
    %c0_i32_0 = arith.constant 0 : i32
    %c0_i32_1 = arith.constant 0 : i32
    return %c0_i32, %c0_i32_0 : i32, i32
  }
  func.func @transform_4(%arg0: i32) -> (i32, i32) {
    %c0_i32 = arith.constant 0 : i32
    %c0_i32_0 = arith.constant 0 : i32
    %c0_i32_1 = arith.constant 0 : i32
    return %c0_i32, %c0_i32_0 : i32, i32
  }
  func.func @transform_5(%arg0: i32) -> (i32, i32) {
    %c0_i32 = arith.constant 0 : i32
    %c0_i32_0 = arith.constant 0 : i32
    %c0_i32_1 = arith.constant 0 : i32
    return %c0_i32, %c0_i32_0 : i32, i32
  }
  func.func @transform_6(%arg0: i32) -> (i32, i32) {
    %c0_i32 = arith.constant 0 : i32
    %c0_i32_0 = arith.constant 0 : i32
    return %arg0, %c0_i32 : i32, i32
  }
}

</mosaic_0001>

<llo_original>
// kernel: tpu_custom_call.1
$region0: #{tpu_custom_call.1}
  #allocation0 [shape = 'u32[]', space=smem, size = 0x4, offset = 0x4, fixed_abs, tag = 'smem constant byte address 0x4 - core index']
  #allocation1 [shape = 'u32[144,128]{1,0:T(1,128)}', space=vmem, size = 0x12000, scoped, tag = 'internal scratch']
  #allocation2 [shape = 'f32[1,1]{1,0:T(1,128)S(1)}', space=vmem, size = 0x200, scoped, tag = 'scoped memory for tpu_custom_call.1']
  %s0 = inlined_call_operand.hbm [shape: bf16[2,8,128], index: 0, kind: input, shape index: {}]
  %s1 = inlined_call_operand.hbm [shape: bf16[128,896], index: 1, kind: input, shape index: {}]
  %s2 = inlined_call_operand.hbm [shape: f32[1,896], index: 2, kind: input, shape index: {}]
  %s3 = inlined_call_operand.hbm [shape: f32[16,16], index: 3, kind: input, shape index: {}]
  %s4 = inlined_call_operand.vmem [shape: f32[1,128], index: 4, kind: input, shape index: {}]
  %s5 = inlined_call_operand.<no memory space> [shape: f32[1,1], index: 5, kind: input, shape index: {}]
  %s6 = inlined_call_operand.hbm [shape: f32[2,512], index: 6, kind: output, shape index: {}]
  %s7 = sld [smem:[#allocation0]]
  $region50: #{tpu_custom_call.1} parent=0
    _
  %s9 = ssub.s32 1, %s7
  %s10 = scalar_select 0, %s9, %s7
  %v11 = vstv %s5
  %12 = vst [vmem:[#allocation2] sm:$0x1] %v11
  $region1: #{tpu_custom_call.1} parent=0
    #allocation3 [shape = 'u8[4096]{0}', space=vmem, size = 0x1000, scoped, tag = 'input window, operand 0, single buffered']
    #allocation4 [shape = 's32[1]{0}', space=sflag, size = 0x4, scoped, tag = 'scoped memory for tpu_custom_call.1']
    #allocation5 [shape = 's32[1]{0}', space=sflag, size = 0x4, scoped, tag = 'scoped memory for tpu_custom_call.1']
    #allocation6 [shape = 'u8[229376]{0}', space=vmem, size = 0x38000, scoped, tag = 'input window, operand 1, single buffered']
    #allocation7 [shape = 's32[1]{0}', space=sflag, size = 0x4, scoped, tag = 'scoped memory for tpu_custom_call.1']
    #allocation8 [shape = 'u8[3584]{0}', space=vmem, size = 0x1000, scoped, tag = 'input window, operand 2, single buffered']
    #allocation9 [shape = 'u8[8192]{0}', space=vmem, size = 0x2000, scoped, tag = 'input window, operand 3, single buffered']
    #allocation10 [shape = 's32[1]{0}', space=sflag, size = 0x4, scoped, tag = 'scoped memory for tpu_custom_call.1']
    #allocation11 [shape = 'u8[4096]{0}', space=vmem, size = 0x1000, scoped, tag = 'output window, operand 0, single buffered']
    %13 = vsyncpa [#allocation4], 0
    %14 = vsyncpa [#allocation7], 0
    %15 = vsyncpa [#allocation10], 0
    %16 = vsyncpa [#allocation5], 0
    // Predicated region
    $region2: #{tpu_custom_call.1} parent=1 // pred_check
      _
    $region3: #{tpu_custom_call.1} parent=1 // pred_check_branch
      %18 = sbr.rel (0) target = $region5
    $region4: #{tpu_custom_call.1} parent=1 // pred_region
      %s20 = ssub.s32 128, 128
      %21 = vsyncadd [#allocation4], %s20
      %s22 = sshll.u32 [#allocation3], 4
      %s23 = int_to_ptr.vmem [resolvable:$true] %s22
      %28 = dma.hbm_to_vmem [thread:$0]  %s0, 128, %s23, [#allocation4], 64, 64, 4
    $region5: #{tpu_custom_call.1} parent=1 // pred_fallthru
      _
    // Predicated region
    $region6: #{tpu_custom_call.1} parent=1 // pred_check
      _
    $region7: #{tpu_custom_call.1} parent=1 // pred_check_branch
      %30 = sbr.rel (0) target = $region9
    $region8: #{tpu_custom_call.1} parent=1 // pred_region
      %s32 = ssub.s32 7168, 7168
      %33 = vsyncadd [#allocation7], %s32
      %s34 = sshll.u32 [#allocation6], 4
      %s35 = int_to_ptr.vmem [resolvable:$true] %s34
      %40 = dma.hbm_to_vmem [thread:$0]  %s1, 7168, %s35, [#allocation7], 448, 448, 28
    $region9: #{tpu_custom_call.1} parent=1 // pred_fallthru
      _
    // Predicated region
    $region10: #{tpu_custom_call.1} parent=1 // pred_check
      _
    $region11: #{tpu_custom_call.1} parent=1 // pred_check_branch
      %42 = sbr.rel (0) target = $region13
    $region12: #{tpu_custom_call.1} parent=1 // pred_region
      %s44 = ssub.s32 112, 112
      %45 = vsyncadd [#allocation7], %s44
      %s47 = sshll.u32 [#allocation8], 4
      %s48 = int_to_ptr.vmem [resolvable:$true] %s47
      %50 = dma.hbm_to_vmem [thread:$0]  %s2, 112, %s48, [#allocation7]
    $region13: #{tpu_custom_call.1} parent=1 // pred_fallthru
      _
    // Predicated region
    $region14: #{tpu_custom_call.1} parent=1 // pred_check
      _
    $region15: #{tpu_custom_call.1} parent=1 // pred_check_branch
      %52 = sbr.rel (0) target = $region17
    $region16: #{tpu_custom_call.1} parent=1 // pred_region
      %s54 = ssub.s32 256, 256
      %55 = vsyncadd [#allocation10], %s54
      %s56 = sshll.u32 [#allocation9], 4
      %s57 = int_to_ptr.vmem [resolvable:$true] %s56
      %62 = dma.hbm_to_vmem [thread:$0]  %s3, 256, %s57, [#allocation10], 128, 128, 8
    $region17: #{tpu_custom_call.1} parent=1 // pred_fallthru
      _
    // Predicated region
    $region18: #{tpu_custom_call.1} parent=1 // pred_check
      _
    $region19: #{tpu_custom_call.1} parent=1 // pred_check_branch
      %64 = sbr.rel (0) target = $region21
    $region20: #{tpu_custom_call.1} parent=1 // pred_region
      _
    $region21: #{tpu_custom_call.1} parent=1 // pred_fallthru
      _
    // Predicated region
    $region22: #{tpu_custom_call.1} parent=1 // pred_check
      _
    $region23: #{tpu_custom_call.1} parent=1 // pred_check_branch
      %66 = sbr.rel (0) target = $region25
    $region24: #{tpu_custom_call.1} parent=1 // pred_region
      _
    $region25: #{tpu_custom_call.1} parent=1 // pred_fallthru
      _
    // Predicated region
    $region26: #{tpu_custom_call.1} parent=1 // pred_check
      _
    $region27: #{tpu_custom_call.1} parent=1 // pred_check_branch
      %68 = sbr.rel (0) target = $region29
    $region28: #{tpu_custom_call.1} parent=1 // pred_region
      %69 = dma.done [#allocation4], 128
    $region29: #{tpu_custom_call.1} parent=1 // pred_fallthru
      _
    // Predicated region
    $region30: #{tpu_custom_call.1} parent=1 // pred_check
      _
    $region31: #{tpu_custom_call.1} parent=1 // pred_check_branch
      %71 = sbr.rel (0) target = $region33
    $region32: #{tpu_custom_call.1} parent=1 // pred_region
      %72 = dma.done [#allocation7], 7168
    $region33: #{tpu_custom_call.1} parent=1 // pred_fallthru
      _
    // Predicated region
    $region34: #{tpu_custom_call.1} parent=1 // pred_check
      _
    $region35: #{tpu_custom_call.1} parent=1 // pred_check_branch
      %74 = sbr.rel (0) target = $region37
    $region36: #{tpu_custom_call.1} parent=1 // pred_region
      %75 = dma.done [#allocation7], 112
    $region37: #{tpu_custom_call.1} parent=1 // pred_fallthru
      _
    // Predicated region
    $region38: #{tpu_custom_call.1} parent=1 // pred_check
      _
    $region39: #{tpu_custom_call.1} parent=1 // pred_check_branch
      %77 = sbr.rel (0) target = $region41
    $region40: #{tpu_custom_call.1} parent=1 // pred_region
      %78 = dma.done [#allocation10], 256
    $region41: #{tpu_custom_call.1} parent=1 // pred_fallthru
      _
    %v80 = vld [vmem:[#allocation3] sm:$0xf]
    %v81 = vld [vmem:[#allocation3 + $0x4] sm:$0xf]
    %v82 = vld [vmem:[#allocation6] sm:$0xff]
    %v83 = vld [vmem:[#allocation6 + $0x8] sm:$0xff]
    %v84 = vld [vmem:[#allocation6 + $0x10] sm:$0xff]
    %v85 = vld [vmem:[#allocation6 + $0x18] sm:$0xf]
    %v86 = vld [vmem:[#allocation6 + $0x1c] sm:$0xff]
    %v87 = vld [vmem:[#allocation6 + $0x24] sm:$0xff]
    %v88 = vld [vmem:[#allocation6 + $0x2c] sm:$0xff]
    %v89 = vld [vmem:[#allocation6 + $0x34] sm:$0xf]
    %v90 = vld [vmem:[#allocation6 + $0x38] sm:$0xff]
    %v91 = vld [vmem:[#allocation6 + $0x40] sm:$0xff]
    %v92 = vld [vmem:[#allocation6 + $0x48] sm:$0xff]
    %v93 = vld [vmem:[#allocation6 + $0x50] sm:$0xf]
    %v94 = vld [vmem:[#allocation6 + $0x54] sm:$0xff]
    %v95 = vld [vmem:[#allocation6 + $0x5c] sm:$0xff]
    %v96 = vld [vmem:[#allocation6 + $0x64] sm:$0xff]
    %v97 = vld [vmem:[#allocation6 + $0x6c] sm:$0xf]
    %v98 = vld [vmem:[#allocation6 + $0x70] sm:$0xff]
    %v99 = vld [vmem:[#allocation6 + $0x78] sm:$0xff]
    %v100 = vld [vmem:[#allocation6 + $0x80] sm:$0xff]
    %v101 = vld [vmem:[#allocation6 + $0x88] sm:$0xf]
    %v102 = vld [vmem:[#allocation6 + $0x8c] sm:$0xff]
    %v103 = vld [vmem:[#allocation6 + $0x94] sm:$0xff]
    %v104 = vld [vmem:[#allocation6 + $0x9c] sm:$0xff]
    %v105 = vld [vmem:[#allocation6 + $0xa4] sm:$0xf]
    %v106 = vld [vmem:[#allocation6 + $0xa8] sm:$0xff]
    %v107 = vld [vmem:[#allocation6 + $0xb0] sm:$0xff]
    %v108 = vld [vmem:[#allocation6 + $0xb8] sm:$0xff]
    %v109 = vld [vmem:[#allocation6 + $0xc0] sm:$0xf]
    %v110 = vld [vmem:[#allocation6 + $0xc4] sm:$0xff]
    %v111 = vld [vmem:[#allocation6 + $0xcc] sm:$0xff]
    %v112 = vld [vmem:[#allocation6 + $0xd4] sm:$0xff]
    %v113 = vld [vmem:[#allocation6 + $0xdc] sm:$0xf]
    %v114 = vld [vmem:[#allocation6 + $0xe0] sm:$0xff]
    %v115 = vld [vmem:[#allocation6 + $0xe8] sm:$0xff]
    %v116 = vld [vmem:[#allocation6 + $0xf0] sm:$0xff]
    %v117 = vld [vmem:[#allocation6 + $0xf8] sm:$0xf]
    %v118 = vld [vmem:[#allocation6 + $0xfc] sm:$0xff]
    %v119 = vld [vmem:[#allocation6 + $0x104] sm:$0xff]
    %v120 = vld [vmem:[#allocation6 + $0x10c] sm:$0xff]
    %v121 = vld [vmem:[#allocation6 + $0x114] sm:$0xf]
    %v122 = vld [vmem:[#allocation6 + $0x118] sm:$0xff]
    %v123 = vld [vmem:[#allocation6 + $0x120] sm:$0xff]
    %v124 = vld [vmem:[#allocation6 + $0x128] sm:$0xff]
    %v125 = vld [vmem:[#allocation6 + $0x130] sm:$0xf]
    %v126 = vld [vmem:[#allocation6 + $0x134] sm:$0xff]
    %v127 = vld [vmem:[#allocation6 + $0x13c] sm:$0xff]
    %v128 = vld [vmem:[#allocation6 + $0x144] sm:$0xff]
    %v129 = vld [vmem:[#allocation6 + $0x14c] sm:$0xf]
    %v130 = vld [vmem:[#allocation6 + $0x150] sm:$0xff]
    %v131 = vld [vmem:[#allocation6 + $0x158] sm:$0xff]
    %v132 = vld [vmem:[#allocation6 + $0x160] sm:$0xff]
    %v133 = vld [vmem:[#allocation6 + $0x168] sm:$0xf]
    %v134 = vld [vmem:[#allocation6 + $0x16c] sm:$0xff]
    %v135 = vld [vmem:[#allocation6 + $0x174] sm:$0xff]
    %v136 = vld [vmem:[#allocation6 + $0x17c] sm:$0xff]
    %v137 = vld [vmem:[#allocation6 + $0x184] sm:$0xf]
    %v138 = vld [vmem:[#allocation6 + $0x188] sm:$0xff]
    %v139 = vld [vmem:[#allocation6 + $0x190] sm:$0xff]
    %v140 = vld [vmem:[#allocation6 + $0x198] sm:$0xff]
    %v141 = vld [vmem:[#allocation6 + $0x1a0] sm:$0xf]
    %v142 = vld [vmem:[#allocation6 + $0x1a4] sm:$0xff]
    %v143 = vld [vmem:[#allocation6 + $0x1ac] sm:$0xff]
    %v144 = vld [vmem:[#allocation6 + $0x1b4] sm:$0xff]
    %v145 = vld [vmem:[#allocation6 + $0x1bc] sm:$0xf]
    %v146 = vld [vmem:[#allocation8] sm:$0xff]
    %v148 = vlaneseq
    %v149 = vshrl.u32 %v148, 7
    %v150 = vsub.s32 0, %v149
    %v151 = vrot.slane %v146, %v150
    %v152 = vlaneseq
    %v153 = vshrl.u32 %v152, 7
    %v154 = vsub.s32 1, %v153
    %v155 = vrot.slane %v146, %v154
    %v156 = vlaneseq
    %v157 = vshrl.u32 %v156, 7
    %v158 = vsub.s32 2, %v157
    %v159 = vrot.slane %v146, %v158
    %v160 = vlaneseq
    %v161 = vshrl.u32 %v160, 7
    %v162 = vsub.s32 3, %v161
    %v163 = vrot.slane %v146, %v162
    %v164 = vlaneseq
    %v165 = vshrl.u32 %v164, 7
    %v166 = vsub.s32 4, %v165
    %v167 = vrot.slane %v146, %v166
    %v168 = vlaneseq
    %v169 = vshrl.u32 %v168, 7
    %v170 = vsub.s32 5, %v169
    %v171 = vrot.slane %v146, %v170
    %v172 = vlaneseq
    %v173 = vshrl.u32 %v172, 7
    %v174 = vsub.s32 6, %v173
    %v175 = vrot.slane %v146, %v174
    %v185 = vunpack.c.l.b16 %v80
    %v186 = vunpack.c.l.b16 %v81
    %v187 = vpack.c.b16 %v186, %v185
    %v253 = vunpack.c.l.b16 %v82
    %v254 = vunpack.c.h.b16 %v82
    %v255 = vunpack.c.l.b16 %v83
    %v256 = vunpack.c.h.b16 %v83
    %v257 = vunpack.c.l.b16 %v84
    %v258 = vunpack.c.h.b16 %v84
    %v259 = vunpack.c.l.b16 %v85
    %v260 = vunpack.c.l.b16 %v86
    %v261 = vunpack.c.h.b16 %v86
    %v262 = vunpack.c.l.b16 %v87
    %v263 = vunpack.c.h.b16 %v87
    %v264 = vunpack.c.l.b16 %v88
    %v265 = vunpack.c.h.b16 %v88
    %v266 = vunpack.c.l.b16 %v89
    %v267 = vunpack.c.l.b16 %v90
    %v268 = vunpack.c.h.b16 %v90
    %v269 = vunpack.c.l.b16 %v91
    %v270 = vunpack.c.h.b16 %v91
    %v271 = vunpack.c.l.b16 %v92
    %v272 = vunpack.c.h.b16 %v92
    %v273 = vunpack.c.l.b16 %v93
    %v274 = vunpack.c.l.b16 %v94
    %v275 = vunpack.c.h.b16 %v94
    %v276 = vunpack.c.l.b16 %v95
    %v277 = vunpack.c.h.b16 %v95
    %v278 = vunpack.c.l.b16 %v96
    %v279 = vunpack.c.h.b16 %v96
    %v280 = vunpack.c.l.b16 %v97
    %v281 = vunpack.c.l.b16 %v98
    %v282 = vunpack.c.h.b16 %v98
    %v283 = vunpack.c.l.b16 %v99
    %v284 = vunpack.c.h.b16 %v99
    %v285 = vunpack.c.l.b16 %v100
    %v286 = vunpack.c.h.b16 %v100
    %v287 = vunpack.c.l.b16 %v101
    %v288 = vunpack.c.l.b16 %v102
    %v289 = vunpack.c.h.b16 %v102
    %v290 = vunpack.c.l.b16 %v103
    %v291 = vunpack.c.h.b16 %v103
    %v292 = vunpack.c.l.b16 %v104
    %v293 = vunpack.c.h.b16 %v104
    %v294 = vunpack.c.l.b16 %v105
    %v295 = vunpack.c.l.b16 %v106
    %v296 = vunpack.c.h.b16 %v106
    %v297 = vunpack.c.l.b16 %v107
    %v298 = vunpack.c.h.b16 %v107
    %v299 = vunpack.c.l.b16 %v108
    %v300 = vunpack.c.h.b16 %v108
    %v301 = vunpack.c.l.b16 %v109
    %v302 = vunpack.c.l.b16 %v110
    %v303 = vunpack.c.h.b16 %v110
    %v304 = vunpack.c.l.b16 %v111
    %v305 = vunpack.c.h.b16 %v111
    %v306 = vunpack.c.l.b16 %v112
    %v307 = vunpack.c.h.b16 %v112
    %v308 = vunpack.c.l.b16 %v113
    %v309 = vunpack.c.l.b16 %v114
    %v310 = vunpack.c.h.b16 %v114
    %v311 = vunpack.c.l.b16 %v115
    %v312 = vunpack.c.h.b16 %v115
    %v313 = vunpack.c.l.b16 %v116
    %v314 = vunpack.c.h.b16 %v116
    %v315 = vunpack.c.l.b16 %v117
    %v316 = vunpack.c.l.b16 %v118
    %v317 = vunpack.c.h.b16 %v118
    %v318 = vunpack.c.l.b16 %v119
    %v319 = vunpack.c.h.b16 %v119
    %v320 = vunpack.c.l.b16 %v120
    %v321 = vunpack.c.h.b16 %v120
    %v322 = vunpack.c.l.b16 %v121
    %v323 = vunpack.c.l.b16 %v122
    %v324 = vunpack.c.h.b16 %v122
    %v325 = vunpack.c.l.b16 %v123
    %v326 = vunpack.c.h.b16 %v123
    %v327 = vunpack.c.l.b16 %v124
    %v328 = vunpack.c.h.b16 %v124
    %v329 = vunpack.c.l.b16 %v125
    %v330 = vunpack.c.l.b16 %v126
    %v331 = vunpack.c.h.b16 %v126
    %v332 = vunpack.c.l.b16 %v127
    %v333 = vunpack.c.h.b16 %v127
    %v334 = vunpack.c.l.b16 %v128
    %v335 = vunpack.c.h.b16 %v128
    %v336 = vunpack.c.l.b16 %v129
    %v337 = vunpack.c.l.b16 %v130
    %v338 = vunpack.c.h.b16 %v130
    %v339 = vunpack.c.l.b16 %v131
    %v340 = vunpack.c.h.b16 %v131
    %v341 = vunpack.c.l.b16 %v132
    %v342 = vunpack.c.h.b16 %v132
    %v343 = vunpack.c.l.b16 %v133
    %v344 = vunpack.c.l.b16 %v134
    %v345 = vunpack.c.h.b16 %v134
    %v346 = vunpack.c.l.b16 %v135
    %v347 = vunpack.c.h.b16 %v135
    %v348 = vunpack.c.l.b16 %v136
    %v349 = vunpack.c.h.b16 %v136
    %v350 = vunpack.c.l.b16 %v137
    %v351 = vunpack.c.l.b16 %v138
    %v352 = vunpack.c.h.b16 %v138
    %v353 = vunpack.c.l.b16 %v139
    %v354 = vunpack.c.h.b16 %v139
    %v355 = vunpack.c.l.b16 %v140
    %v356 = vunpack.c.h.b16 %v140
    %v357 = vunpack.c.l.b16 %v141
    %v358 = vunpack.c.l.b16 %v142
    %v359 = vunpack.c.h.b16 %v142
    %v360 = vunpack.c.l.b16 %v143
    %v361 = vunpack.c.h.b16 %v143
    %v362 = vunpack.c.l.b16 %v144
    %v363 = vunpack.c.h.b16 %v144
    %v364 = vunpack.c.l.b16 %v145
    %v365 = vpack.c.b16 %v260, %v253
    %v366 = vpack.c.b16 %v261, %v254
    %v367 = vpack.c.b16 %v262, %v255
    %v368 = vpack.c.b16 %v263, %v256
    %v369 = vpack.c.b16 %v264, %v257
    %v370 = vpack.c.b16 %v265, %v258
    %v371 = vpack.c.b16 %v266, %v259
    %v372 = vpack.c.b16 %v274, %v267
    %v373 = vpack.c.b16 %v275, %v268
    %v374 = vpack.c.b16 %v276, %v269
    %v375 = vpack.c.b16 %v277, %v270
    %v376 = vpack.c.b16 %v278, %v271
    %v377 = vpack.c.b16 %v279, %v272
    %v378 = vpack.c.b16 %v280, %v273
    %v379 = vpack.c.b16 %v288, %v281
    %v380 = vpack.c.b16 %v289, %v282
    %v381 = vpack.c.b16 %v290, %v283
    %v382 = vpack.c.b16 %v291, %v284
    %v383 = vpack.c.b16 %v292, %v285
    %v384 = vpack.c.b16 %v293, %v286
    %v385 = vpack.c.b16 %v294, %v287
    %v386 = vpack.c.b16 %v302, %v295
    %v387 = vpack.c.b16 %v303, %v296
    %v388 = vpack.c.b16 %v304, %v297
    %v389 = vpack.c.b16 %v305, %v298
    %v390 = vpack.c.b16 %v306, %v299
    %v391 = vpack.c.b16 %v307, %v300
    %v392 = vpack.c.b16 %v308, %v301
    %v393 = vpack.c.b16 %v316, %v309
    %v394 = vpack.c.b16 %v317, %v310
    %v395 = vpack.c.b16 %v318, %v311
    %v396 = vpack.c.b16 %v319, %v312
    %v397 = vpack.c.b16 %v320, %v313
    %v398 = vpack.c.b16 %v321, %v314
    %v399 = vpack.c.b16 %v322, %v315
    %v400 = vpack.c.b16 %v330, %v323
    %v401 = vpack.c.b16 %v331, %v324
    %v402 = vpack.c.b16 %v332, %v325
    %v403 = vpack.c.b16 %v333, %v326
    %v404 = vpack.c.b16 %v334, %v327
    %v405 = vpack.c.b16 %v335, %v328
    %v406 = vpack.c.b16 %v336, %v329
    %v407 = vpack.c.b16 %v344, %v337
    %v408 = vpack.c.b16 %v345, %v338
    %v409 = vpack.c.b16 %v346, %v339
    %v410 = vpack.c.b16 %v347, %v340
    %v411 = vpack.c.b16 %v348, %v341
    %v412 = vpack.c.b16 %v349, %v342
    %v413 = vpack.c.b16 %v350, %v343
    %v414 = vpack.c.b16 %v358, %v351
    %v415 = vpack.c.b16 %v359, %v352
    %v416 = vpack.c.b16 %v360, %v353
    %v417 = vpack.c.b16 %v361, %v354
    %v418 = vpack.c.b16 %v362, %v355
    %v419 = vpack.c.b16 %v363, %v356
    %v420 = vpack.c.b16 %v364, %v357
    %477 = vmatprep.subr.bf16.mxu0 %v415
    %478 = vmatpush1.bf16.msra.mxu0 %v414
    %479 = vmatprep.subr.bf16.mxu0 %v408
    %480 = vmatpush1.bf16.msra.mxu0 %v407
    %481 = vmatprep.subr.bf16.mxu0 %v401
    %482 = vmatpush1.bf16.msra.mxu0 %v400
    %483 = vmatprep.subr.bf16.mxu0 %v394
    %484 = vmatpush1.bf16.msra.mxu0 %v393
    %485 = vmatprep.subr.bf16.mxu0 %v387
    %486 = vmatpush1.bf16.msra.mxu0 %v386
    %487 = vmatprep.subr.bf16.mxu0 %v380
    %488 = vmatpush1.bf16.msra.mxu0 %v379
    %489 = vmatprep.subr.bf16.mxu0 %v373
    %490 = vmatpush1.bf16.msra.mxu0 %v372
    %491 = vmatprep.subr.bf16.mxu0 %v366
    %492 = vmatpush1.bf16.msra.mxu0 %v365
    %493 = vmatprep.subr.bf16.mxu0 0
    %494 = vmatpush2.bf16.msra.mxu0 0
    %495 = vmatprep.subr.bf16.mxu0 0
    %496 = vmatpush2.bf16.msra.mxu0 0
    %497 = vmatprep.subr.bf16.mxu0 0
    %498 = vmatpush2.bf16.msra.mxu0 0
    %499 = vmatprep.subr.bf16.mxu0 0
    %500 = vmatpush2.bf16.msra.mxu0 0
    %501 = vmatprep.subr.bf16.mxu0 0
    %502 = vmatpush2.bf16.msra.mxu0 0
    %503 = vmatprep.subr.bf16.mxu0 0
    %504 = vmatpush2.bf16.msra.mxu0 0
    %505 = vmatprep.subr.bf16.mxu0 0
    %506 = vmatpush2.bf16.msra.mxu0 0
    %507 = vmatprep.subr.bf16.mxu0 0
    %508 = vmatpush2.bf16.msra.mxu0 0
    %509 = vmatprep.mubr.bf16.mxu0 0
    %510 = vmatmul.mubr.bf16.gmra.mxu0 %v187
    %v511 = vpop.f32.mrf.mxu0
    %v512 = vadd.f32 %v151, %v511
    %v513 = vpop.f32.mrf.mxu0
    %v514 = vadd.f32 %v155, %v513
    %v515 = vpop.f32.mrf.mxu0
    %v516 = vadd.f32 %v151, %v515
    %v517 = vpop.f32.mrf.mxu0
    %v518 = vadd.f32 %v155, %v517
    %519 = vdwg.mxu0
    %520 = vmatprep.subr.bf16.mxu0 %v417
    %521 = vmatpush1.bf16.msra.mxu0 %v416
    %522 = vmatprep.subr.bf16.mxu0 %v410
    %523 = vmatpush1.bf16.msra.mxu0 %v409
    %524 = vmatprep.subr.bf16.mxu0 %v403
    %525 = vmatpush1.bf16.msra.mxu0 %v402
    %526 = vmatprep.subr.bf16.mxu0 %v396
    %527 = vmatpush1.bf16.msra.mxu0 %v395
    %528 = vmatprep.subr.bf16.mxu0 %v389
    %529 = vmatpush1.bf16.msra.mxu0 %v388
    %530 = vmatprep.subr.bf16.mxu0 %v382
    %531 = vmatpush1.bf16.msra.mxu0 %v381
    %532 = vmatprep.subr.bf16.mxu0 %v375
    %533 = vmatpush1.bf16.msra.mxu0 %v374
    %534 = vmatprep.subr.bf16.mxu0 %v368
    %535 = vmatpush1.bf16.msra.mxu0 %v367
    %536 = vmatprep.subr.bf16.mxu0 0
    %537 = vmatpush2.bf16.msra.mxu0 0
    %538 = vmatprep.subr.bf16.mxu0 0
    %539 = vmatpush2.bf16.msra.mxu0 0
    %540 = vmatprep.subr.bf16.mxu0 0
    %541 = vmatpush2.bf16.msra.mxu0 0
    %542 = vmatprep.subr.bf16.mxu0 0
    %543 = vmatpush2.bf16.msra.mxu0 0
    %544 = vmatprep.subr.bf16.mxu0 0
    %545 = vmatpush2.bf16.msra.mxu0 0
    %546 = vmatprep.subr.bf16.mxu0 0
    %547 = vmatpush2.bf16.msra.mxu0 0
    %548 = vmatprep.subr.bf16.mxu0 0
    %549 = vmatpush2.bf16.msra.mxu0 0
    %550 = vmatprep.subr.bf16.mxu0 0
    %551 = vmatpush2.bf16.msra.mxu0 0
    %552 = vmatprep.mubr.bf16.mxu0 0
    %553 = vmatmul.mubr.bf16.gmra.mxu0 %v187
    %v554 = vpop.f32.mrf.mxu0
    %v555 = vadd.f32 %v159, %v554
    %v556 = vpop.f32.mrf.mxu0
    %v557 = vadd.f32 %v163, %v556
    %v558 = vpop.f32.mrf.mxu0
    %v559 = vadd.f32 %v159, %v558
    %v560 = vpop.f32.mrf.mxu0
    %v561 = vadd.f32 %v163, %v560
    %562 = vdwg.mxu0
    %563 = vmatprep.subr.bf16.mxu0 %v419
    %564 = vmatpush1.bf16.msra.mxu0 %v418
    %565 = vmatprep.subr.bf16.mxu0 %v412
    %566 = vmatpush1.bf16.msra.mxu0 %v411
    %567 = vmatprep.subr.bf16.mxu0 %v405
    %568 = vmatpush1.bf16.msra.mxu0 %v404
    %569 = vmatprep.subr.bf16.mxu0 %v398
    %570 = vmatpush1.bf16.msra.mxu0 %v397
    %571 = vmatprep.subr.bf16.mxu0 %v391
    %572 = vmatpush1.bf16.msra.mxu0 %v390
    %573 = vmatprep.subr.bf16.mxu0 %v384
    %574 = vmatpush1.bf16.msra.mxu0 %v383
    %575 = vmatprep.subr.bf16.mxu0 %v377
    %576 = vmatpush1.bf16.msra.mxu0 %v376
    %577 = vmatprep.subr.bf16.mxu0 %v370
    %578 = vmatpush1.bf16.msra.mxu0 %v369
    %579 = vmatprep.subr.bf16.mxu0 0
    %580 = vmatpush2.bf16.msra.mxu0 0
    %581 = vmatprep.subr.bf16.mxu0 0
    %582 = vmatpush2.bf16.msra.mxu0 0
    %583 = vmatprep.subr.bf16.mxu0 0
    %584 = vmatpush2.bf16.msra.mxu0 0
    %585 = vmatprep.subr.bf16.mxu0 0
    %586 = vmatpush2.bf16.msra.mxu0 0
    %587 = vmatprep.subr.bf16.mxu0 0
    %588 = vmatpush2.bf16.msra.mxu0 0
    %589 = vmatprep.subr.bf16.mxu0 0
    %590 = vmatpush2.bf16.msra.mxu0 0
    %591 = vmatprep.subr.bf16.mxu0 0
    %592 = vmatpush2.bf16.msra.mxu0 0
    %593 = vmatprep.subr.bf16.mxu0 0
    %594 = vmatpush2.bf16.msra.mxu0 0
    %595 = vmatprep.mubr.bf16.mxu0 0
    %596 = vmatmul.mubr.bf16.gmra.mxu0 %v187
    %v597 = vpop.f32.mrf.mxu0
    %v598 = vadd.f32 %v167, %v597
    %v599 = vpop.f32.mrf.mxu0
    %v600 = vadd.f32 %v171, %v599
    %v601 = vpop.f32.mrf.mxu0
    %v602 = vadd.f32 %v167, %v601
    %v603 = vpop.f32.mrf.mxu0
    %v604 = vadd.f32 %v171, %v603
    %605 = vdwg.mxu0
    %606 = vmatprep.subr.bf16.mxu0 0
    %607 = vmatpush1.bf16.msra.mxu0 %v420
    %608 = vmatprep.subr.bf16.mxu0 0
    %609 = vmatpush1.bf16.msra.mxu0 %v413
    %610 = vmatprep.subr.bf16.mxu0 0
    %611 = vmatpush1.bf16.msra.mxu0 %v406
    %612 = vmatprep.subr.bf16.mxu0 0
    %613 = vmatpush1.bf16.msra.mxu0 %v399
    %614 = vmatprep.subr.bf16.mxu0 0
    %615 = vmatpush1.bf16.msra.mxu0 %v392
    %616 = vmatprep.subr.bf16.mxu0 0
    %617 = vmatpush1.bf16.msra.mxu0 %v385
    %618 = vmatprep.subr.bf16.mxu0 0
    %619 = vmatpush1.bf16.msra.mxu0 %v378
    %620 = vmatprep.subr.bf16.mxu0 0
    %621 = vmatpush1.bf16.msra.mxu0 %v371
    %622 = vmatprep.subr.bf16.mxu0 0
    %623 = vmatpush2.bf16.msra.mxu0 0
    %624 = vmatprep.subr.bf16.mxu0 0
    %625 = vmatpush2.bf16.msra.mxu0 0
    %626 = vmatprep.subr.bf16.mxu0 0
    %627 = vmatpush2.bf16.msra.mxu0 0
    %628 = vmatprep.subr.bf16.mxu0 0
    %629 = vmatpush2.bf16.msra.mxu0 0
    %630 = vmatprep.subr.bf16.mxu0 0
    %631 = vmatpush2.bf16.msra.mxu0 0
    %632 = vmatprep.subr.bf16.mxu0 0
    %633 = vmatpush2.bf16.msra.mxu0 0
    %634 = vmatprep.subr.bf16.mxu0 0
    %635 = vmatpush2.bf16.msra.mxu0 0
    %636 = vmatprep.subr.bf16.mxu0 0
    %637 = vmatpush2.bf16.msra.mxu0 0
    %638 = vmatprep.mubr.bf16.mxu0 0
    %639 = vmatmul.mubr.bf16.gmra.mxu0 %v187
    %v640 = vpop.f32.mrf.mxu0
    %v641 = vadd.f32 %v175, %v640
    %v642 = vpop.f32.mrf.mxu0
    %v643 = vpop.f32.mrf.mxu0
    %v644 = vadd.f32 %v175, %v643
    %v645 = vpop.f32.mrf.mxu0
    %646 = vdwg.mxu0
    %v647 = vpack.c.bf16 %v602, %v598
    %v648 = vpack.c.bf16 %v604, %v600
    %v649 = vpack.c.bf16 %v644, %v641
    %v650 = vld [vmem:[#allocation9] sm:$0xff]
    %v651 = vld [vmem:[#allocation9 + $0x8] sm:$0xff]
    %652 = vmatprep.subr.bf16.mxu0 0
    %653 = vmatpush1.bf16.xpose.msra.mxu0 0
    %654 = vmatprep.subr.bf16.mxu0 0
    %655 = vmatpush1.bf16.xpose.msra.mxu0 0
    %656 = vmatprep.subr.bf16.mxu0 0
    %657 = vmatpush1.bf16.xpose.msra.mxu0 0
    %658 = vmatprep.subr.bf16.mxu0 0
    %659 = vmatpush1.bf16.xpose.msra.mxu0 0
    %660 = vmatprep.subr.bf16.mxu0 0
    %661 = vmatpush1.bf16.xpose.msra.mxu0 0
    %662 = vmatprep.subr.bf16.mxu0 0
    %663 = vmatpush1.bf16.xpose.msra.mxu0 0
    %664 = vmatprep.subr.bf16.mxu0 0
    %665 = vmatpush1.bf16.xpose.msra.mxu0 0
    %666 = vmatprep.subr.bf16.mxu0 0
    %667 = vmatpush1.bf16.xpose.msra.mxu0 %v648
    %668 = vmatprep.subr.bf16.mxu0 0
    %669 = vmatpush2.bf16.xpose.msra.mxu0 0
    %670 = vmatprep.subr.bf16.mxu0 0
    %671 = vmatpush2.bf16.xpose.msra.mxu0 0
    %672 = vmatprep.subr.bf16.mxu0 0
    %673 = vmatpush2.bf16.xpose.msra.mxu0 0
    %674 = vmatprep.subr.bf16.mxu0 0
    %675 = vmatpush2.bf16.xpose.msra.mxu0 0
    %676 = vmatprep.subr.bf16.mxu0 0
    %677 = vmatpush2.bf16.xpose.msra.mxu0 0
    %678 = vmatprep.subr.bf16.mxu0 0
    %679 = vmatpush2.bf16.xpose.msra.mxu0 0
    %680 = vmatprep.subr.bf16.mxu0 0
    %681 = vmatpush2.bf16.xpose.msra.mxu0 0
    %682 = vmatprep.subr.bf16.mxu0 0
    %683 = vmatpush2.bf16.xpose.msra.mxu0 0
    %684 = vmatprep.mubr.bf16.mxu0 0
    %685 = vmatmul.mubr.bf16.gmra.mxu0 %v647
    %v686 = vpop.f32.mrf.mxu0
    %v687 = vadd.f32 %v650, %v686
    %v688 = vpop.f32.mrf.mxu0
    %v689 = vpop.f32.mrf.mxu0
    %v690 = vadd.f32 %v651, %v689
    %v691 = vpop.f32.mrf.mxu0
    %692 = vdwg.mxu0
    %vm693 = vcmask 130048
    %v694 = vsel %vm693, %v687, -inf
    %695 = vmax.xlane.f32.xlu0 %v694
    %v696 = vpop.xlane.xlu0 %695
    %v697 = vsel %vm693, %v690, -inf
    %698 = vmax.xlane.f32.xlu0 %v697
    %v699 = vpop.xlane.xlu0 %698
    %v700 = vsub.f32 %v687, %v696
    %v701 = vsub.f32 %v690, %v699
    %v702 = vmul.f32 %v700, 1.442695
    %v703 = vpow.pop %v702
    %v704 = vmul.f32 %v701, 1.442695
    %v705 = vpow.pop %v704
    %v706 = vsel %vm693, %v703, 0.0
    %707 = vadd.xlane.f32.xlu0 %v706
    %v708 = vpop.xlane.xlu0 %707
    %v709 = vsel %vm693, %v705, 0.0
    %710 = vadd.xlane.f32.xlu0 %v709
    %v711 = vpop.xlane.xlu0 %710
    %v712 = vpack.c.bf16 %v705, %v703
    %v714 = vsel %vm693, %v712, 0
    %716 = vmatprep.subr.bf16.mxu0 0
    %717 = vmatpush1.bf16.msra.mxu0 0
    %718 = vmatprep.subr.bf16.mxu0 0
    %719 = vmatpush1.bf16.msra.mxu0 0
    %720 = vmatprep.subr.bf16.mxu0 0
    %721 = vmatpush1.bf16.msra.mxu0 0
    %722 = vmatprep.subr.bf16.mxu0 0
    %723 = vmatpush1.bf16.msra.mxu0 0
    %724 = vmatprep.subr.bf16.mxu0 0
    %725 = vmatpush1.bf16.msra.mxu0 0
    %726 = vmatprep.subr.bf16.mxu0 0
    %727 = vmatpush1.bf16.msra.mxu0 0
    %728 = vmatprep.subr.bf16.mxu0 0
    %729 = vmatpush1.bf16.msra.mxu0 0
    %730 = vmatprep.subr.bf16.mxu0 0
    %731 = vmatpush1.bf16.msra.mxu0 %v649
    %732 = vmatprep.subr.bf16.mxu0 0
    %733 = vmatpush2.bf16.msra.mxu0 0
    %734 = vmatprep.subr.bf16.mxu0 0
    %735 = vmatpush2.bf16.msra.mxu0 0
    %736 = vmatprep.subr.bf16.mxu0 0
    %737 = vmatpush2.bf16.msra.mxu0 0
    %738 = vmatprep.subr.bf16.mxu0 0
    %739 = vmatpush2.bf16.msra.mxu0 0
    %740 = vmatprep.subr.bf16.mxu0 0
    %741 = vmatpush2.bf16.msra.mxu0 0
    %742 = vmatprep.subr.bf16.mxu0 0
    %743 = vmatpush2.bf16.msra.mxu0 0
    %744 = vmatprep.subr.bf16.mxu0 0
    %745 = vmatpush2.bf16.msra.mxu0 0
    %746 = vmatprep.subr.bf16.mxu0 0
    %747 = vmatpush2.bf16.msra.mxu0 0
    %748 = vmatprep.mubr.bf16.mxu0 0
    %749 = vmatmul.mubr.bf16.gmra.mxu0 %v714
    %v750 = vpop.f32.mrf.mxu0
    %v751 = vadd.f32 0.0, %v750
    %v752 = vpop.f32.mrf.mxu0
    %v753 = vpop.f32.mrf.mxu0
    %v754 = vadd.f32 0.0, %v753
    %v755 = vpop.f32.mrf.mxu0
    %756 = vdwg.mxu0
    %v757 = vrcp.pop %v708
    %v758 = vrcp.pop %v711
    %v759 = vmul.f32 %v751, %v757
    %v760 = vmul.f32 %v754, %v758
    %v761 = vld [vmem:[%s4] sm:$0x1]
    %v763 = vlaneseq
    %v764 = vshrl.u32 %v763, 7
    %v765 = vsub.s32 0, %v764
    %v766 = vrot.slane %v761, %v765
    %v768 = vmul.f32 %v759, %v766
    %v769 = vmul.f32 %v760, %v766
    %770 = vadd.xlane.f32.xlu0 %v768
    %v771 = vpop.xlane.xlu0 %770
    %772 = vadd.xlane.f32.xlu0 %v769
    %v773 = vpop.xlane.xlu0 %772
    %v774 = vld [vmem:[#allocation2] sm:$0x1]
    %v776 = vlaneseq
    %v777 = vshrl.u32 %v776, 7
    %v778 = vsub.s32 0, %v777
    %v779 = vrot.slane %v774, %v778
    %v781 = vadd.f32 %v771, %v779
    %v782 = vadd.f32 %v773, %v779
    %v783 = vand.u32 2147483647, %v781
    %v784 = vand.u32 2147483647, %v782
    %v785 = vadd.f32 %v783, 1.0
    %v786 = vadd.f32 %v784, 1.0
    %v787 = vrcp.pop %v785
    %v788 = vmul.f32 %v781, %v787
    %v789 = vrcp.pop %v786
    %v790 = vmul.f32 %v782, %v789
    %792 = vset.pattern.permute.xlu0 0
    %793 = vperm.xlu0 %792, %v788
    %v794 = vpop.permute.xlu0 %793
    %797 = vset.pattern.permute.xlu0 0
    %798 = vperm.xlu0 %797, %v790
    %v799 = vpop.permute.xlu0 %798
    %v801 = vmul.f32 %v794, %v512
    %v802 = vmul.f32 %v794, %v514
    %v803 = vmul.f32 %v794, %v555
    %v804 = vmul.f32 %v794, %v557
    %v805 = vmul.f32 %v799, %v516
    %v806 = vmul.f32 %v799, %v518
    %v807 = vmul.f32 %v799, %v559
    %v808 = vmul.f32 %v799, %v561
    %v809 = vrot.slane %v801, 4
    %v810 = vadd.f32 %v801, %v809
    %v811 = vrot.slane %v810, 2
    %v812 = vadd.f32 %v810, %v811
    %v813 = vrot.slane %v812, 1
    %v814 = vadd.f32 %v812, %v813
    %v815 = vrot.slane %v802, 4
    %v816 = vadd.f32 %v802, %v815
    %v817 = vrot.slane %v816, 2
    %v818 = vadd.f32 %v816, %v817
    %v819 = vrot.slane %v818, 1
    %v820 = vadd.f32 %v818, %v819
    %v821 = vrot.slane %v803, 4
    %v822 = vadd.f32 %v803, %v821
    %v823 = vrot.slane %v822, 2
    %v824 = vadd.f32 %v822, %v823
    %v825 = vrot.slane %v824, 1
    %v826 = vadd.f32 %v824, %v825
    %v827 = vrot.slane %v804, 4
    %v828 = vadd.f32 %v804, %v827
    %v829 = vrot.slane %v828, 2
    %v830 = vadd.f32 %v828, %v829
    %v831 = vrot.slane %v830, 1
    %v832 = vadd.f32 %v830, %v831
    %v833 = vrot.slane %v805, 4
    %v834 = vadd.f32 %v805, %v833
    %v835 = vrot.slane %v834, 2
    %v836 = vadd.f32 %v834, %v835
    %v837 = vrot.slane %v836, 1
    %v838 = vadd.f32 %v836, %v837
    %v839 = vrot.slane %v806, 4
    %v840 = vadd.f32 %v806, %v839
    %v841 = vrot.slane %v840, 2
    %v842 = vadd.f32 %v840, %v841
    %v843 = vrot.slane %v842, 1
    %v844 = vadd.f32 %v842, %v843
    %v845 = vrot.slane %v807, 4
    %v846 = vadd.f32 %v807, %v845
    %v847 = vrot.slane %v846, 2
    %v848 = vadd.f32 %v846, %v847
    %v849 = vrot.slane %v848, 1
    %v850 = vadd.f32 %v848, %v849
    %v851 = vrot.slane %v808, 4
    %v852 = vadd.f32 %v808, %v851
    %v853 = vrot.slane %v852, 2
    %v854 = vadd.f32 %v852, %v853
    %v855 = vrot.slane %v854, 1
    %v856 = vadd.f32 %v854, %v855
    %v857 = vmul.f32 %v788, %v788
    %v858 = vmul.f32 %v790, %v790
    %vm859 = vcmask 7168
    %v860 = vsel %vm859, %v857, 0.0
    %v861 = vrot.slane %v860, 4
    %v862 = vadd.f32 %v860, %v861
    %v863 = vrot.slane %v862, 2
    %v864 = vadd.f32 %v862, %v863
    %v865 = vrot.slane %v864, 1
    %v866 = vadd.f32 %v864, %v865
    %v867 = vsel %vm859, %v858, 0.0
    %v868 = vrot.slane %v867, 4
    %v869 = vadd.f32 %v867, %v868
    %v870 = vrot.slane %v869, 2
    %v871 = vadd.f32 %v869, %v870
    %v872 = vrot.slane %v871, 1
    %v873 = vadd.f32 %v871, %v872
    %v874 = vmax.f32 %v866, 1e-24
    %v875 = vmax.f32 %v873, 1e-24
    %v876 = vrsqrt.pop %v874
    %v877 = vrsqrt.pop %v875
    %879 = vset.pattern.permute.xlu0 0
    %880 = vperm.xlu0 %879, %v876
    %v881 = vpop.permute.xlu0 %880
    %884 = vset.pattern.permute.xlu0 0
    %885 = vperm.xlu0 %884, %v877
    %v886 = vpop.permute.xlu0 %885
    %v888 = vmul.f32 %v814, %v881
    %v889 = vmul.f32 %v820, %v881
    %v890 = vmul.f32 %v826, %v881
    %v891 = vmul.f32 %v832, %v881
    %v892 = vmul.f32 %v838, %v886
    %v893 = vmul.f32 %v844, %v886
    %v894 = vmul.f32 %v850, %v886
    %v895 = vmul.f32 %v856, %v886
    %v904 = vcombine.low %v888, %v889
    %v905 = vcombine.low %v890, %v891
    %v907 = vunpack.c.l.s4 1983009808
    %v908 = vunpack.c.0.s8 %v907
    %v909 = vlaneseq
    %v910 = vshrl.u32 %v909, 7
    %v911 = vsub.s32 %v908, %v910
    %v912 = vrot.slane %v904, %v911
    %v914 = vunpack.c.l.s4 1983009808
    %v915 = vunpack.c.0.s8 %v914
    %v916 = vlaneseq
    %v917 = vshrl.u32 %v916, 7
    %v918 = vsub.s32 %v915, %v917
    %v919 = vrot.slane %v905, %v918
    %v920 = vcombine.low %v912, %v919
    %v921 = vcombine.low %v892, %v893
    %v922 = vcombine.low %v894, %v895
    %v924 = vunpack.c.l.s4 1983009808
    %v925 = vunpack.c.0.s8 %v924
    %v926 = vlaneseq
    %v927 = vshrl.u32 %v926, 7
    %v928 = vsub.s32 %v925, %v927
    %v929 = vrot.slane %v921, %v928
    %v931 = vunpack.c.l.s4 1983009808
    %v932 = vunpack.c.0.s8 %v931
    %v933 = vlaneseq
    %v934 = vshrl.u32 %v933, 7
    %v935 = vsub.s32 %v932, %v934
    %v936 = vrot.slane %v922, %v935
    %v937 = vcombine.low %v929, %v936
    %vm938 = vcmask 1044484
    %v939 = vsel %vm938, %v920, %v920
    %vm940 = vcmask 1046534
    %v941 = vsel %vm940, %v920, %v939
    %v942 = vrot.slane %v937, 7
    %vm943 = vcmask 1041409
    %v944 = vsel %vm943, %v942, %v941
    %vm945 = vcmask 1043459
    %v946 = vsel %vm945, %v942, %v944
    %vm947 = vcmask 1045509
    %v948 = vsel %vm947, %v942, %v946
    %vm949 = vcmask 1047559
    %v950 = vsel %vm949, %v942, %v948
    %952 = vst [vmem:[#allocation11] sm:$0xff] %v950
    // Predicated region
    $region42: #{tpu_custom_call.1} parent=1 // pred_check
      _
    $region43: #{tpu_custom_call.1} parent=1 // pred_check_branch
      %954 = sbr.rel (0) target = $region45
    $region44: #{tpu_custom_call.1} parent=1 // pred_region
      %s956 = ssub.s32 128, 128
      %957 = vsyncadd [#allocation5], %s956
      %s959 = sshll.u32 [#allocation11], 4
      %s960 = int_to_ptr.vmem [resolvable:$true] %s959
      %962 = dma.vmem_to_hbm [thread:$0]  %s960, 128, %s6, [#allocation5]
    $region45: #{tpu_custom_call.1} parent=1 // pred_fallthru
      _
    // Predicated region
    $region46: #{tpu_custom_call.1} parent=1 // pred_check
      _
    $region47: #{tpu_custom_call.1} parent=1 // pred_check_branch
      %964 = sbr.rel (0) target = $region49
    $region48: #{tpu_custom_call.1} parent=1 // pred_region
      %965 = dma.done [#allocation5], 128
    $region49: #{tpu_custom_call.1} parent=1 // pred_fallthru
      _
    %966 = vsyncpa [#allocation4], 1
    %967 = vsyncpa [#allocation7], 1
    %968 = vsyncpa [#allocation10], 1
    %969 = vsyncpa [#allocation5], 1

</llo_original>
